<compile_context>
chip_gen: v5e
topology: v5e:2x2
jax: 0.10.0
libtpu: 0.0.40
codegen_flags: <defaults>
</compile_context>

<pallas_src>
import jax
import jax.numpy as jnp
from jax.experimental import pallas as pl
from jax.experimental.pallas import tpu as pltpu


def _reconstructed_relu_kernel(x_ref, w1_ref, b1_ref, w2_ref, b2_ref, out_ref):
    # x_ref:  (batch, in_dim)          compute dtype (bf16 by default)
    # w1_ref: (in_dim, NB*hidden)      compute dtype
    # b1_ref: (1, NB*hidden)           f32
    # w2_ref: (NB, hidden)             f32
    # b2_ref: (1, NB)                  f32
    # out_ref:(batch, NB)              f32
    nb, hidden = w2_ref.shape

    # Layer 1: one wide MXU matmul for all NB nets, f32 accumulation.
    h = jnp.dot(x_ref[...], w1_ref[...],
                preferred_element_type=jnp.float32)          # (batch, NB*hidden)
    h = jnp.maximum(h + b1_ref[...], 0.0)                    # bias + ReLU (VPU)

    # Layer 2: per-net scalar head as VPU multiply + hidden-axis reduce
    # (avoids NB tiny M=1 MXU matmuls).
    batch = h.shape[0]
    h3 = h.reshape(batch, nb, hidden)                         # (batch, NB, hidden)
    o = jnp.sum(h3 * w2_ref[...][None, :, :], axis=-1)        # (batch, NB)

    out_ref[...] = (o + b2_ref[...]).astype(out_ref.dtype)    # lane-dense store


def _choose_nets_per_block(num_nets, in_dim, hidden, itemsize):
    """Nets folded into one grid step.

    Small net counts (the realistic case for this module: a handful of scalar
    nets) go in a single block, so every BlockSpec equals the full array shape
    (no (8,128) divisibility concerns). Large counts use 128-net blocks so the
    matmul width NB*hidden and the (batch, NB) output block stay lane-aligned
    and the 'parallel' grid has >=2 blocks for v7x's two TensorCores.
    """
    w1_block_bytes = num_nets * in_dim * hidden * itemsize
    if num_nets <= 128 and w1_block_bytes <= (8 << 20):
        return num_nets
    return 128


def reconstructed_relu(x, w1, b1, w2, b2, *, compute_dtype=jnp.bfloat16):
    """x: (batch, in_dim). Per-net params batched on a leading axis:
         W1: (N, in_dim, hidden)  b1: (N, 1, hidden)
         W2: (N, 1, hidden)       b2: (N, 1, 1)
       Returns (batch, N), matching torch's stack([net_i(x)]).squeeze().T."""
    batch, in_dim = x.shape
    num_nets, _, hidden = w1.shape

    nb = _choose_nets_per_block(num_nets, in_dim, hidden,
                                jnp.dtype(compute_dtype).itemsize)
    n_pad = pl.cdiv(num_nets, nb) * nb
    grid = n_pad // nb

    # Host-side weight relayout (one-time preprocessing of the frozen
    # scalar-net parameters in a real deployment):
    #   W1 -> (in_dim, N*hidden), b1 -> (1, N*hidden),
    #   W2 -> (N, hidden),        b2 -> (1, N).
    w1_mat = jnp.transpose(w1, (1, 0, 2)).reshape(in_dim, num_nets * hidden)
    b1_row = b1.reshape(1, num_nets * hidden)
    w2_mat = w2.reshape(num_nets, hidden)
    b2_row = b2.reshape(1, num_nets)

    if n_pad != num_nets:
        extra = n_pad - num_nets
        w1_mat = jnp.pad(w1_mat, ((0, 0), (0, extra * hidden)))
        b1_row = jnp.pad(b1_row, ((0, 0), (0, extra * hidden)))
        w2_mat = jnp.pad(w2_mat, ((0, extra), (0, 0)))
        b2_row = jnp.pad(b2_row, ((0, 0), (0, extra)))

    # bf16 MXU operands (f32 accumulation happens inside the kernel).
    x_c = x.astype(compute_dtype)
    w1_c = w1_mat.astype(compute_dtype)

    out = pl.pallas_call(
        _reconstructed_relu_kernel,
        out_shape=jax.ShapeDtypeStruct((batch, n_pad), jnp.float32),
        grid_spec=pltpu.PrefetchScalarGridSpec(
            num_scalar_prefetch=0,
            grid=(grid,),
            in_specs=[
                pl.BlockSpec((batch, in_dim), lambda i: (0, 0)),        # x (resident)
                pl.BlockSpec((in_dim, nb * hidden), lambda i: (0, i)),  # W1 block
                pl.BlockSpec((1, nb * hidden), lambda i: (0, i)),       # b1 block
                pl.BlockSpec((nb, hidden), lambda i: (i, 0)),           # W2 block
                pl.BlockSpec((1, nb), lambda i: (0, i)),                # b2 block
            ],
            out_specs=pl.BlockSpec((batch, nb), lambda i: (0, i)),      # lane-dense
        ),
        compiler_params=pltpu.CompilerParams(
            dimension_semantics=("parallel",),
            vmem_limit_bytes=32 * 1024 * 1024,
        ),
    )(x_c, w1_c, b1_row, w2_mat, b2_row)

    if n_pad != num_nets:
        out = out[:, :num_nets]
    return out


def _reference(x, w1, b1, w2, b2, compute_dtype=jnp.bfloat16):
    # Pure-JAX reference following the same numeric path (bf16 matmul inputs,
    # f32 accumulation) so tolerances can stay tight.
    xc = x.astype(compute_dtype)
    w1c = w1.astype(compute_dtype)
    h = jnp.einsum("bi,nih->nbh", xc, w1c,
                   preferred_element_type=jnp.float32)          # (N, batch, hidden)
    h = jnp.maximum(h + b1, 0.0)
    o = jnp.sum(h * w2, axis=-1) + b2[:, :, 0]                  # (N, batch)
    return o.T                                                   # (batch, N)


if __name__ == "__main__":
    batch, in_dim, hidden, num_nets = 8, 16, 32, 4

    key = jax.random.PRNGKey(0)
    kx, k1, k2, k3, k4 = jax.random.split(key, 5)

    x = jax.random.normal(kx, (batch, in_dim), dtype=jnp.float32)
    w1 = jax.random.normal(k1, (num_nets, in_dim, hidden), dtype=jnp.float32) * 0.1
    b1 = jax.random.normal(k2, (num_nets, 1, hidden), dtype=jnp.float32) * 0.1
    w2 = jax.random.normal(k3, (num_nets, 1, hidden), dtype=jnp.float32) * 0.1
    b2 = jax.random.normal(k4, (num_nets, 1, 1), dtype=jnp.float32) * 0.1

    y = jax.block_until_ready(reconstructed_relu(x, w1, b1, w2, b2))
    y_ref = _reference(x, w1, b1, w2, b2)

    assert y.shape == (batch, num_nets), y.shape
    assert jnp.allclose(y, y_ref, atol=1e-4, rtol=1e-4), "mismatch vs reference"
    print("KERNEL_OK")
</pallas_src>

<mosaic_0001>
module attributes {stable_mosaic.version = 11 : i64} {
  func.func @_reconstructed_relu_kernel(%arg0: i32, %arg1: memref<8x16xbf16, #tpu.memory_space<vmem>>, %arg2: memref<16x128xbf16, #tpu.memory_space<vmem>>, %arg3: memref<1x128xf32, #tpu.memory_space<vmem>>, %arg4: memref<4x32xf32, #tpu.memory_space<vmem>>, %arg5: memref<1x4xf32, #tpu.memory_space<vmem>>, %arg6: memref<8x4xf32, #tpu.memory_space<vmem>>) attributes {dimension_semantics = [#tpu.dimension_semantics<parallel>], iteration_bounds = array<i64: 1>, scalar_prefetch = 0 : i64, scratch_operands = 0 : i64, tpu.core_type = #tpu.core_type<tc>, window_params = [{pipeline_mode = #tpu.pipeline_mode<synchronous>, transform_indices = @transform_0, window_bounds = array<i64: 8, 16>}, {transform_indices = @transform_1, window_bounds = array<i64: 16, 128>}, {transform_indices = @transform_2, window_bounds = array<i64: 1, 128>}, {transform_indices = @transform_3, window_bounds = array<i64: 4, 32>}, {transform_indices = @transform_4, window_bounds = array<i64: 1, 4>}, {transform_indices = @transform_5, window_bounds = array<i64: 8, 4>}]} {
    %c0 = arith.constant 0 : index
    %c0_0 = arith.constant 0 : index
    %0 = vector.load %arg1[%c0, %c0_0] : memref<8x16xbf16, #tpu.memory_space<vmem>>, vector<8x16xbf16>
    %c0_1 = arith.constant 0 : index
    %c0_2 = arith.constant 0 : index
    %1 = vector.load %arg2[%c0_1, %c0_2] : memref<16x128xbf16, #tpu.memory_space<vmem>>, vector<16x128xbf16>
    %cst = arith.constant dense<0.000000e+00> : vector<8x128xf32>
    %2 = tpu.matmul %0, %1, %cst {dimension_numbers = #tpu.dot_dimension_numbers<[1], [0], [0], [1], [0, 0, 1, 1], [], []>} : vector<8x16xbf16>, vector<16x128xbf16>, vector<8x128xf32> -> vector<8x128xf32>
    %c0_3 = arith.constant 0 : index
    %c0_4 = arith.constant 0 : index
    %3 = vector.load %arg3[%c0_3, %c0_4] : memref<1x128xf32, #tpu.memory_space<vmem>>, vector<1x128xf32>
    %4 = vector.broadcast %3 : vector<1x128xf32> to vector<8x128xf32>
    %5 = arith.addf %2, %4 : vector<8x128xf32>
    %cst_5 = arith.constant 0.000000e+00 : f32
    %6 = vector.broadcast %cst_5 : f32 to vector<8x128xf32>
    %7 = arith.maximumf %5, %6 : vector<8x128xf32>
    %8 = vector.shape_cast %7 : vector<8x128xf32> to vector<8x4x32xf32>
    %c0_6 = arith.constant 0 : index
    %c0_7 = arith.constant 0 : index
    %9 = vector.load %arg4[%c0_6, %c0_7] : memref<4x32xf32, #tpu.memory_space<vmem>>, vector<4x32xf32>
    %10 = vector.shape_cast %9 : vector<4x32xf32> to vector<1x4x32xf32>
    %11 = vector.broadcast %10 : vector<1x4x32xf32> to vector<8x4x32xf32>
    %12 = arith.mulf %8, %11 : vector<8x4x32xf32>
    %cst_8 = arith.constant dense<0.000000e+00> : vector<8x4xf32>
    %13 = vector.multi_reduction <add>, %12, %cst_8 [2] : vector<8x4x32xf32> to vector<8x4xf32>
    %c0_9 = arith.constant 0 : index
    %c0_10 = arith.constant 0 : index
    %14 = vector.load %arg5[%c0_9, %c0_10] : memref<1x4xf32, #tpu.memory_space<vmem>>, vector<1x4xf32>
    %15 = vector.broadcast %14 : vector<1x4xf32> to vector<8x4xf32>
    %16 = arith.addf %13, %15 : vector<8x4xf32>
    %c0_11 = arith.constant 0 : index
    %c0_12 = arith.constant 0 : index
    %17 = vector.load %arg6[%c0_11, %c0_12] : memref<8x4xf32, #tpu.memory_space<vmem>>, vector<8x4xf32>
    tpu.vector_store %arg6[%c0_11, %c0_12], %16 {strides = array<i32>} : memref<8x4xf32, #tpu.memory_space<vmem>>, vector<8x4xf32>,
    return
  }
  func.func @transform_0(%arg0: i32) -> (i32, i32) {
    %c0_i32 = arith.constant 0 : i32
    %c0_i32_0 = arith.constant 0 : i32
    %c0_i32_1 = arith.constant 0 : i32
    return %c0_i32, %c0_i32_0 : i32, i32
  }
  func.func @transform_1(%arg0: i32) -> (i32, i32) {
    %c0_i32 = arith.constant 0 : i32
    %c0_i32_0 = arith.constant 0 : i32
    return %c0_i32, %arg0 : i32, i32
  }
  func.func @transform_2(%arg0: i32) -> (i32, i32) {
    %c0_i32 = arith.constant 0 : i32
    %c0_i32_0 = arith.constant 0 : i32
    return %c0_i32, %arg0 : i32, i32
  }
  func.func @transform_3(%arg0: i32) -> (i32, i32) {
    %c0_i32 = arith.constant 0 : i32
    %c0_i32_0 = arith.constant 0 : i32
    return %arg0, %c0_i32 : i32, i32
  }
  func.func @transform_4(%arg0: i32) -> (i32, i32) {
    %c0_i32 = arith.constant 0 : i32
    %c0_i32_0 = arith.constant 0 : i32
    return %c0_i32, %arg0 : i32, i32
  }
  func.func @transform_5(%arg0: i32) -> (i32, i32) {
    %c0_i32 = arith.constant 0 : i32
    %c0_i32_0 = arith.constant 0 : i32
    return %c0_i32, %arg0 : i32, i32
  }
}

</mosaic_0001>

<llo_original>
// kernel: tpu_custom_call.1
$region0: #{tpu_custom_call.1}
  #allocation0 [shape = 'u32[]', space=smem, size = 0x4, offset = 0x4, fixed_abs, tag = 'smem constant byte address 0x4 - core index']
  #allocation1 [shape = 'u32[72,128]{1,0:T(1,128)}', space=vmem, size = 0x9000, scoped, tag = 'internal scratch']
  %s0 = inlined_call_operand.hbm [shape: bf16[8,16], index: 0, kind: input, shape index: {}]
  %s1 = inlined_call_operand.hbm [shape: bf16[16,128], index: 1, kind: input, shape index: {}]
  %s2 = inlined_call_operand.vmem [shape: f32[1,128], index: 2, kind: input, shape index: {}]
  %s3 = inlined_call_operand.hbm [shape: f32[4,32], index: 3, kind: input, shape index: {}]
  %s4 = inlined_call_operand.vmem [shape: f32[1,4], index: 4, kind: input, shape index: {}]
  %s5 = inlined_call_operand.vmem [shape: f32[8,4], index: 5, kind: output, shape index: {}]
  %s6 = sld [smem:[#allocation0]]
  $region42: #{tpu_custom_call.1} parent=0
    _
  %s8 = ssub.s32 1, %s6
  %s9 = scalar_select 0, %s8, %s6
  $region1: #{tpu_custom_call.1} parent=0
    #allocation2 [shape = 'u8[2048]{0}', space=vmem, size = 0x800, scoped, tag = 'input window, operand 0, single buffered']
    #allocation3 [shape = 's32[1]{0}', space=sflag, size = 0x4, scoped, tag = 'scoped memory for tpu_custom_call.1']
    #allocation4 [shape = 'u8[4096]{0}', space=vmem, size = 0x1000, scoped, tag = 'input window, operand 1, single buffered']
    #allocation5 [shape = 's32[1]{0}', space=sflag, size = 0x4, scoped, tag = 'scoped memory for tpu_custom_call.1']
    #allocation6 [shape = 'u8[2048]{0}', space=vmem, size = 0x800, scoped, tag = 'input window, operand 3, single buffered']
    %10 = vsyncpa [#allocation3], 0
    %11 = vsyncpa [#allocation5], 0
    // Predicated region
    $region2: #{tpu_custom_call.1} parent=1 // pred_check
      _
    $region3: #{tpu_custom_call.1} parent=1 // pred_check_branch
      %13 = sbr.rel (0) target = $region5
    $region4: #{tpu_custom_call.1} parent=1 // pred_region
      %15 = vsyncadd [#allocation3], 0
      %s17 = sshll.u32 %s0, 4
      %s18 = int_to_ptr.hbm [resolvable:$true] %s17
      %s19 = sshll.u32 [#allocation2], 4
      %s20 = int_to_ptr.vmem [resolvable:$true] %s19
      %22 = dma.hbm_to_vmem [thread:$0]  %s18, 64, %s20, [#allocation3]
    $region5: #{tpu_custom_call.1} parent=1 // pred_fallthru
      _
    // Predicated region
    $region6: #{tpu_custom_call.1} parent=1 // pred_check
      _
    $region7: #{tpu_custom_call.1} parent=1 // pred_check_branch
      %24 = sbr.rel (0) target = $region9
    $region8: #{tpu_custom_call.1} parent=1 // pred_region
      %26 = vsyncadd [#allocation5], 0
      %s27 = sshll.u32 %s1, 4
      %s28 = int_to_ptr.hbm [resolvable:$true] %s27
      %s29 = sshll.u32 [#allocation4], 4
      %s30 = int_to_ptr.vmem [resolvable:$true] %s29
      %35 = dma.hbm_to_vmem [thread:$0]  %s28, 128, %s30, [#allocation5], 64, 64, 4
    $region9: #{tpu_custom_call.1} parent=1 // pred_fallthru
      _
    // Predicated region
    $region10: #{tpu_custom_call.1} parent=1 // pred_check
      _
    $region11: #{tpu_custom_call.1} parent=1 // pred_check_branch
      %37 = sbr.rel (0) target = $region13
    $region12: #{tpu_custom_call.1} parent=1 // pred_region
      _
    $region13: #{tpu_custom_call.1} parent=1 // pred_fallthru
      _
    // Predicated region
    $region14: #{tpu_custom_call.1} parent=1 // pred_check
      _
    $region15: #{tpu_custom_call.1} parent=1 // pred_check_branch
      %39 = sbr.rel (0) target = $region17
    $region16: #{tpu_custom_call.1} parent=1 // pred_region
      %41 = vsyncadd [#allocation5], 0
      %s43 = sshll.u32 %s3, 4
      %s44 = int_to_ptr.hbm [resolvable:$true] %s43
      %s45 = sshll.u32 [#allocation6], 4
      %s46 = int_to_ptr.vmem [resolvable:$true] %s45
      %48 = dma.hbm_to_vmem [thread:$0]  %s44, 64, %s46, [#allocation5]
    $region17: #{tpu_custom_call.1} parent=1 // pred_fallthru
      _
    // Predicated region
    $region18: #{tpu_custom_call.1} parent=1 // pred_check
      _
    $region19: #{tpu_custom_call.1} parent=1 // pred_check_branch
      %50 = sbr.rel (0) target = $region21
    $region20: #{tpu_custom_call.1} parent=1 // pred_region
      _
    $region21: #{tpu_custom_call.1} parent=1 // pred_fallthru
      _
    // Predicated region
    $region22: #{tpu_custom_call.1} parent=1 // pred_check
      _
    $region23: #{tpu_custom_call.1} parent=1 // pred_check_branch
      %52 = sbr.rel (0) target = $region25
    $region24: #{tpu_custom_call.1} parent=1 // pred_region
      %54 = dma.done [#allocation3], 64
    $region25: #{tpu_custom_call.1} parent=1 // pred_fallthru
      _
    // Predicated region
    $region26: #{tpu_custom_call.1} parent=1 // pred_check
      _
    $region27: #{tpu_custom_call.1} parent=1 // pred_check_branch
      %56 = sbr.rel (0) target = $region29
    $region28: #{tpu_custom_call.1} parent=1 // pred_region
      %58 = dma.done [#allocation5], 128
    $region29: #{tpu_custom_call.1} parent=1 // pred_fallthru
      _
    // Predicated region
    $region30: #{tpu_custom_call.1} parent=1 // pred_check
      _
    $region31: #{tpu_custom_call.1} parent=1 // pred_check_branch
      %60 = sbr.rel (0) target = $region33
    $region32: #{tpu_custom_call.1} parent=1 // pred_region
      %62 = dma.done [#allocation5], 64
    $region33: #{tpu_custom_call.1} parent=1 // pred_fallthru
      _
    %v64 = vld [vmem:[#allocation2] sm:$0xf]
    %v65 = vld [vmem:[#allocation4] sm:$0xf]
    %v66 = vld [vmem:[#allocation4 + $0x4] sm:$0xf]
    %v67 = vld [vmem:[%s2] sm:$0x1]
    %v69 = vperm.slane %v67, 0
    %v73 = vunpack.c.l.b16 %v65
    %v74 = vunpack.c.l.b16 %v66
    %v75 = vpack.c.b16 %v74, %v73
    %vm77 = vcmask 130048
    %v79 = vsel %vm77, %v64, 0
    %81 = vmatpush.bf16.msra.mxu0 0
    %82 = vmatpush.bf16.msra.mxu0 0
    %83 = vmatpush.bf16.msra.mxu0 0
    %84 = vmatpush.bf16.msra.mxu0 0
    %85 = vmatpush.bf16.msra.mxu0 0
    %86 = vmatpush.bf16.msra.mxu0 0
    %87 = vmatpush.bf16.msra.mxu0 0
    %88 = vmatpush.bf16.msra.mxu0 %v75
    %89 = vmatmul.bf16.gmra.mxu0 %v79
    %v90 = vpop.f32.mrf.mxu0
    %v91 = vadd.f32 %v69, %v90
    %v92 = vpop.f32.mrf.mxu0
    %93 = vdwg.mxu0
    %v94 = vmax.f32 %v91, 0.0
    %96 = vrot.lane.b32.xlu0 %v94, 96
    %v97 = vpop.permute.xlu0 %96
    %99 = vrot.lane.b32.xlu0 %v94, 64
    %v100 = vpop.permute.xlu0 %99
    %102 = vrot.lane.b32.xlu0 %v94, 32
    %v103 = vpop.permute.xlu0 %102
    %v105 = vrot.slane %v100, 4
    %vm106 = vcmask 1047556
    %v107 = vsel %vm106, %v105, %v94
    %v108 = vrot.slane %v94, 4
    %v109 = vsel %vm106, %v100, %v108
    %v111 = vunpack.c.l.s4 1983009808
    %v112 = vunpack.c.0.s8 %v111
    %v113 = vperm.slane %v107, %v112
    %v115 = vunpack.c.l.s4 1983009808
    %v116 = vunpack.c.0.s8 %v115
    %v117 = vperm.slane %v109, %v116
    %v118 = vrot.slane %v103, 4
    %v119 = vsel %vm106, %v118, %v97
    %v120 = vrot.slane %v97, 4
    %v121 = vsel %vm106, %v103, %v120
    %v123 = vunpack.c.l.s4 1983009808
    %v124 = vunpack.c.0.s8 %v123
    %v125 = vperm.slane %v119, %v124
    %v127 = vunpack.c.l.s4 1983009808
    %v128 = vunpack.c.0.s8 %v127
    %v129 = vperm.slane %v121, %v128
    %v130 = vrot.slane %v125, 4
    %v131 = vsel %vm106, %v130, %v113
    %v132 = vrot.slane %v113, 4
    %v133 = vsel %vm106, %v125, %v132
    %v135 = vunpack.c.l.s4 1934713408
    %v136 = vunpack.c.0.s8 %v135
    %v137 = vperm.slane %v131, %v136
    %v139 = vunpack.c.l.s4 1934713408
    %v140 = vunpack.c.0.s8 %v139
    %v141 = vperm.slane %v133, %v140
    %v142 = vrot.slane %v129, 4
    %v143 = vsel %vm106, %v142, %v117
    %v144 = vrot.slane %v117, 4
    %v145 = vsel %vm106, %v129, %v144
    %v147 = vunpack.c.l.s4 1934713408
    %v148 = vunpack.c.0.s8 %v147
    %v149 = vperm.slane %v143, %v148
    %v151 = vunpack.c.l.s4 1934713408
    %v152 = vunpack.c.0.s8 %v151
    %v153 = vperm.slane %v145, %v152
    %v154 = vrot.slane %v137, 4
    %v155 = vsel %vm106, 0.0, %v154
    %v156 = vrot.slane %v141, 4
    %v157 = vsel %vm106, 0.0, %v156
    %v158 = vrot.slane %v149, 4
    %v159 = vsel %vm106, 0.0, %v158
    %v160 = vrot.slane %v153, 4
    %v161 = vsel %vm106, 0.0, %v160
    %v162 = vld [vmem:[#allocation6] sm:$0xf]
    %v163 = vmul.f32 %v137, %v162
    %v164 = vmul.f32 %v155, %v162
    %v165 = vmul.f32 %v141, %v162
    %v166 = vmul.f32 %v157, %v162
    %v167 = vmul.f32 %v149, %v162
    %v168 = vmul.f32 %v159, %v162
    %v169 = vmul.f32 %v153, %v162
    %v170 = vmul.f32 %v161, %v162
    %vm171 = vcmask 257024
    %v172 = vsel %vm171, %v163, 0.0
    %173 = vadd.xlane.f32.xlu0 %v172
    %v174 = vpop.xlane.xlu0 %173
    %v175 = vsel %vm171, %v164, 0.0
    %176 = vadd.xlane.f32.xlu0 %v175
    %v177 = vpop.xlane.xlu0 %176
    %v178 = vsel %vm171, %v165, 0.0
    %179 = vadd.xlane.f32.xlu0 %v178
    %v180 = vpop.xlane.xlu0 %179
    %v181 = vsel %vm171, %v166, 0.0
    %182 = vadd.xlane.f32.xlu0 %v181
    %v183 = vpop.xlane.xlu0 %182
    %v184 = vsel %vm171, %v167, 0.0
    %185 = vadd.xlane.f32.xlu0 %v184
    %v186 = vpop.xlane.xlu0 %185
    %v187 = vsel %vm171, %v168, 0.0
    %188 = vadd.xlane.f32.xlu0 %v187
    %v189 = vpop.xlane.xlu0 %188
    %v190 = vsel %vm171, %v169, 0.0
    %191 = vadd.xlane.f32.xlu0 %v190
    %v192 = vpop.xlane.xlu0 %191
    %v193 = vsel %vm171, %v170, 0.0
    %194 = vadd.xlane.f32.xlu0 %v193
    %v195 = vpop.xlane.xlu0 %194
    %v196 = vld [vmem:[%s4] sm:$0x1]
    %v198 = vperm.slane %v196, 0
    %v199 = vlaneseq
    %v200 = vshrl.u32 %v199, 7
    %202 = vset.pattern.permute.xlu0 %v200
    %203 = vperm.xlu0 %202, %v198
    %v204 = vpop.permute.xlu0 %203
    %v206 = vadd.f32 %v174, %v204
    %v207 = vadd.f32 %v177, %v204
    %v208 = vadd.f32 %v180, %v204
    %v209 = vadd.f32 %v183, %v204
    %v210 = vadd.f32 %v186, %v204
    %v211 = vadd.f32 %v189, %v204
    %v212 = vadd.f32 %v192, %v204
    %v213 = vadd.f32 %v195, %v204
    %222 = vset.pattern.permute.xlu0 0
    %223 = vperm.xlu0 %222, %v206
    %v224 = vpop.permute.xlu0 %223
    %225 = vset.pattern.permute.xlu0 0
    %226 = vperm.xlu0 %225, %v207
    %v227 = vpop.permute.xlu0 %226
    %228 = vset.pattern.permute.xlu0 0
    %229 = vperm.xlu0 %228, %v208
    %v230 = vpop.permute.xlu0 %229
    %231 = vset.pattern.permute.xlu0 0
    %232 = vperm.xlu0 %231, %v209
    %v233 = vpop.permute.xlu0 %232
    %234 = vset.pattern.permute.xlu0 0
    %235 = vperm.xlu0 %234, %v210
    %v236 = vpop.permute.xlu0 %235
    %237 = vset.pattern.permute.xlu0 0
    %238 = vperm.xlu0 %237, %v211
    %v239 = vpop.permute.xlu0 %238
    %240 = vset.pattern.permute.xlu0 0
    %241 = vperm.xlu0 %240, %v212
    %v242 = vpop.permute.xlu0 %241
    %243 = vset.pattern.permute.xlu0 0
    %244 = vperm.xlu0 %243, %v213
    %v245 = vpop.permute.xlu0 %244
    %v246 = vlaneseq
    %v247 = vand.u32 %v246, 127
    %v248 = vperm.slane %v224, %v247
    %v249 = vperm.slane %v227, %v247
    %v250 = vperm.slane %v230, %v247
    %v251 = vperm.slane %v233, %v247
    %v252 = vperm.slane %v236, %v247
    %v253 = vperm.slane %v239, %v247
    %v254 = vperm.slane %v242, %v247
    %v255 = vperm.slane %v245, %v247
    %vm256 = vcmask 1041409
    %v257 = vsel %vm256, %v249, %v248
    %vm258 = vcmask 1042434
    %v259 = vsel %vm258, %v250, %v257
    %vm260 = vcmask 1043459
    %v261 = vsel %vm260, %v251, %v259
    %vm262 = vcmask 1044484
    %v263 = vsel %vm262, %v252, %v261
    %vm264 = vcmask 1045509
    %v265 = vsel %vm264, %v253, %v263
    %vm266 = vcmask 1046534
    %v267 = vsel %vm266, %v254, %v265
    %vm268 = vcmask 1047559
    %v269 = vsel %vm268, %v255, %v267
    %vm271 = vcmask 31744
    %272 = vst.msk [vmem:[%s5] sm:$0xff] %vm271, %v269
    // Predicated region
    $region34: #{tpu_custom_call.1} parent=1 // pred_check
      _
    $region35: #{tpu_custom_call.1} parent=1 // pred_check_branch
      %274 = sbr.rel (0) target = $region37
    $region36: #{tpu_custom_call.1} parent=1 // pred_region
      _
    $region37: #{tpu_custom_call.1} parent=1 // pred_fallthru
      _
    // Predicated region
    $region38: #{tpu_custom_call.1} parent=1 // pred_check
      _
    $region39: #{tpu_custom_call.1} parent=1 // pred_check_branch
      %276 = sbr.rel (0) target = $region41
    $region40: #{tpu_custom_call.1} parent=1 // pred_region
      _
    $region41: #{tpu_custom_call.1} parent=1 // pred_fallthru
      _
    %277 = vsyncpa [#allocation3], 1
    %278 = vsyncpa [#allocation5], 1

</llo_original>
